<compile_context>
chip_gen: v5e
topology: v5e:2x2
jax: 0.10.0
libtpu: 0.0.40
codegen_flags: <defaults>
</compile_context>

<pallas_src>
import functools
import math

import jax
import jax.numpy as jnp
from jax import lax
from jax.experimental import pallas as pl
from jax.experimental.pallas import tpu as pltpu


# --------------------------------------------------------------------------
# Kernel 1: K/V projections, grid=(B,).  Full-width (Nk,Ckv)@(Ckv,C) matmuls,
# computed once per batch element (independent of the Nq tiling).
# --------------------------------------------------------------------------
def _kv_proj_kernel(k_ref, v_ref, wk_ref, bk_ref, wv_ref, bv_ref,
                    kp_ref, vp_ref):
    xk = k_ref[0]                                            # (Nk, Ckv)
    xv = v_ref[0]
    kp = jnp.dot(xk, wk_ref[...], preferred_element_type=jnp.float32)
    vp = jnp.dot(xv, wv_ref[...], preferred_element_type=jnp.float32)
    kp_ref[0] = (kp + bk_ref[...]).astype(kp_ref.dtype)      # (Nk, C)
    vp_ref[0] = (vp + bv_ref[...]).astype(vp_ref.dtype)


# --------------------------------------------------------------------------
# Kernel 2: attention + output projection, grid=(B, Nq // tq), both parallel.
# --------------------------------------------------------------------------
def _attn_kernel(q_ref, kp_ref, vp_ref, wq_ref, bq_ref, wo_ref, bo_ref,
                 o_ref, oslab_ref, *, num_heads, head_dim, matmul_dtype):
    xq = q_ref[0]                                            # (tq, C)

    # Full-width Q projection (1/sqrt(hd) already folded into wq/bq).
    qh = (jnp.dot(xq, wq_ref[...], preferred_element_type=jnp.float32)
          + bq_ref[...]).astype(matmul_dtype)                # (tq, C)

    # Per-head attention.  Scores / PV contractions are intrinsically
    # hd-deep; operands come from static lane slices of dense slabs and the
    # per-head outputs are written lane-contiguously into a (tq, C) slab.
    for h in range(num_heads):
        lo = h * head_dim
        q_h = qh[:, lo:lo + head_dim]                        # (tq, hd)
        k_h = kp_ref[0, :, lo:lo + head_dim]                 # (Nk, hd)
        v_h = vp_ref[0, :, lo:lo + head_dim]                 # (Nk, hd)

        # Contract head_dim of both operands directly (no explicit k.T).
        s = lax.dot_general(q_h, k_h,
                            dimension_numbers=(((1,), (1,)), ((), ())),
                            preferred_element_type=jnp.float32)  # (tq, Nk)

        # Numerically stable softmax in f32; approx reciprocal -> EUP slot.
        s = s - jnp.max(s, axis=-1, keepdims=True)
        p = jnp.exp(s)
        p = p * pl.reciprocal(jnp.sum(p, axis=-1, keepdims=True), approx=True)

        oslab_ref[:, lo:lo + head_dim] = jnp.dot(
            p.astype(matmul_dtype), v_h,
            preferred_element_type=jnp.float32)              # (tq, hd)

    # Single deep output projection over the full (tq, C) slab.
    out = (jnp.dot(oslab_ref[...].astype(matmul_dtype), wo_ref[...],
                   preferred_element_type=jnp.float32) + bo_ref[...])
    o_ref[0] = out.astype(o_ref.dtype)


# --------------------------------------------------------------------------
# Host-side helpers.
# --------------------------------------------------------------------------
def _q_tile_cap():
    try:
        kind = jax.devices()[0].device_kind.lower()
    except Exception:
        return 256
    if "v5" in kind:     # v5-class: 128x128 MXU, 128-aligned tiles suffice.
        return 128
    if "v7" in kind:     # v7x: 64 MiB VMEM per TC -> keep q tiles <= 256.
        return 256
    return 512           # v6e: 128 MiB VMEM, prefer big tiles.


def _pick_q_tile(nq):
    cap = _q_tile_cap()
    for t in (512, 256, 128):
        if t <= cap and nq % t == 0:
            return t
    return nq             # small / ragged Nq: single full-extent tile.


def _vmem_limit_bytes(tq, nk, c, mm_bytes, out_bytes):
    # Double-buffered inputs/outputs + f32 intermediates, with 2x margin.
    q_tile = 2 * tq * c * mm_bytes
    kv = 2 * 2 * nk * c * mm_bytes
    weights = 2 * 2 * c * c * mm_bytes + 4 * 4 * c
    o_tile = 2 * tq * c * out_bytes
    inter = tq * nk * 4 + 3 * tq * c * 4
    est = 2 * (q_tile + kv + weights + o_tile + inter)
    return int(min(64 * 2**20, max(32 * 2**20, est)))


def multi_head_attention(query, key, value, params, *, num_heads,
                         matmul_dtype=jnp.bfloat16):
    """query: (B, Nq, C); key/value: (B, Nk, Ckv).  Returns (B, Nq, C)."""
    B, Nq, C = query.shape
    _, Nk, Ckv = key.shape
    assert C % num_heads == 0
    hd = C // num_heads
    scale = 1.0 / math.sqrt(hd)
    f32 = jnp.float32
    mm_bytes = jnp.dtype(matmul_dtype).itemsize

    # PyTorch Linear weights are (out, in); transpose to (in, out), keep them
    # lane-dense (no per-head split), fold the score scale into q-projection.
    wq = (params["wq"].astype(f32).T * scale).astype(matmul_dtype)   # (C, C)
    wk = params["wk"].astype(f32).T.astype(matmul_dtype)             # (Ckv, C)
    wv = params["wv"].astype(f32).T.astype(matmul_dtype)             # (Ckv, C)
    wo = params["wo"].astype(f32).T.astype(matmul_dtype)             # (C, C)
    bq = (params["bq"].astype(f32) * scale).reshape(1, C)
    bk = params["bk"].astype(f32).reshape(1, C)
    bv = params["bv"].astype(f32).reshape(1, C)
    bo = params["bo"].astype(f32).reshape(1, C)

    # Cast activations once on the host (halves q/K/V DMA bytes for bf16).
    q_in = query.astype(matmul_dtype)
    k_in = key.astype(matmul_dtype)
    v_in = value.astype(matmul_dtype)

    # --- Stage 1: K/V projections (once per batch element). ---
    kp, vp = pl.pallas_call(
        _kv_proj_kernel,
        out_shape=(jax.ShapeDtypeStruct((B, Nk, C), matmul_dtype),
                   jax.ShapeDtypeStruct((B, Nk, C), matmul_dtype)),
        grid=(B,),
        in_specs=[
            pl.BlockSpec((1, Nk, Ckv), lambda b: (b, 0, 0)),   # key
            pl.BlockSpec((1, Nk, Ckv), lambda b: (b, 0, 0)),   # value
            pl.BlockSpec((Ckv, C), lambda b: (0, 0)),          # wk^T
            pl.BlockSpec((1, C), lambda b: (0, 0)),            # bk
            pl.BlockSpec((Ckv, C), lambda b: (0, 0)),          # wv^T
            pl.BlockSpec((1, C), lambda b: (0, 0)),            # bv
        ],
        out_specs=(pl.BlockSpec((1, Nk, C), lambda b: (b, 0, 0)),
                   pl.BlockSpec((1, Nk, C), lambda b: (b, 0, 0))),
        compiler_params=pltpu.CompilerParams(
            dimension_semantics=("parallel",)),
    )(k_in, v_in, wk, bk, wv, bv)

    # --- Stage 2: attention + output projection over q tiles. ---
    tq = _pick_q_tile(Nq)
    grid = (B, Nq // tq)
    kernel = functools.partial(_attn_kernel, num_heads=num_heads,
                               head_dim=hd, matmul_dtype=matmul_dtype)

    return pl.pallas_call(
        kernel,
        out_shape=jax.ShapeDtypeStruct((B, Nq, C), query.dtype),
        grid=grid,
        in_specs=[
            pl.BlockSpec((1, tq, C), lambda b, i: (b, i, 0)),   # query tile
            pl.BlockSpec((1, Nk, C), lambda b, i: (b, 0, 0)),   # projected K
            pl.BlockSpec((1, Nk, C), lambda b, i: (b, 0, 0)),   # projected V
            pl.BlockSpec((C, C), lambda b, i: (0, 0)),          # wq^T (scaled)
            pl.BlockSpec((1, C), lambda b, i: (0, 0)),          # bq (scaled)
            pl.BlockSpec((C, C), lambda b, i: (0, 0)),          # wo^T
            pl.BlockSpec((1, C), lambda b, i: (0, 0)),          # bo
        ],
        out_specs=pl.BlockSpec((1, tq, C), lambda b, i: (b, i, 0)),
        scratch_shapes=[pltpu.VMEM((tq, C), jnp.float32)],      # per-head slab
        compiler_params=pltpu.CompilerParams(
            dimension_semantics=("parallel", "parallel"),
            vmem_limit_bytes=_vmem_limit_bytes(
                tq, Nk, C, mm_bytes, jnp.dtype(query.dtype).itemsize)),
    )(q_in, kp, vp, wq, bq, wo, bo)


# --------------------------------------------------------------------------
# Pure-JAX reference (mirrors the PyTorch module forward).
# --------------------------------------------------------------------------
def _reference(query, key, value, params, *, num_heads):
    B, Nq, C = query.shape
    _, Nk, _ = key.shape
    hd = C // num_heads
    q = query @ params["wq"].T + params["bq"]
    k = key @ params["wk"].T + params["bk"]
    v = value @ params["wv"].T + params["bv"]
    q = q.reshape(B, Nq, num_heads, hd).transpose(0, 2, 1, 3)
    k = k.reshape(B, Nk, num_heads, hd).transpose(0, 2, 1, 3)
    v = v.reshape(B, Nk, num_heads, hd).transpose(0, 2, 1, 3)
    s = jnp.einsum("bhqd,bhkd->bhqk", q, k) / math.sqrt(hd)
    p = jax.nn.softmax(s, axis=-1)
    o = jnp.einsum("bhqk,bhkd->bhqd", p, v)
    o = o.transpose(0, 2, 1, 3).reshape(B, Nq, C)
    return o @ params["wo"].T + params["bo"]


if __name__ == "__main__":
    key0 = jax.random.PRNGKey(0)
    keys = jax.random.split(key0, 16)

    def make_params(dim, kv_dim, ks):
        return {
            "wq": jax.random.normal(ks[0], (dim, dim), jnp.float32) * 0.1,
            "bq": jax.random.normal(ks[1], (dim,), jnp.float32) * 0.1,
            "wk": jax.random.normal(ks[2], (dim, kv_dim), jnp.float32) * 0.1,
            "bk": jax.random.normal(ks[3], (dim,), jnp.float32) * 0.1,
            "wv": jax.random.normal(ks[4], (dim, kv_dim), jnp.float32) * 0.1,
            "bv": jax.random.normal(ks[5], (dim,), jnp.float32) * 0.1,
            "wo": jax.random.normal(ks[6], (dim, dim), jnp.float32) * 0.1,
            "bo": jax.random.normal(ks[7], (dim,), jnp.float32) * 0.1,
        }

    # --- Test 1: module-default small self-attention shapes. ---
    B, Nq, Nk, dim, kv_dim, heads = 2, 8, 8, 32, 32, 4
    params = make_params(dim, kv_dim, keys[:8])
    query = jax.random.normal(keys[8], (B, Nq, dim), jnp.float32)
    kv_in = jax.random.normal(keys[9], (B, Nk, kv_dim), jnp.float32)

    ref = _reference(query, kv_in, kv_in, params, num_heads=heads)

    out_f32 = multi_head_attention(query, kv_in, kv_in, params,
                                   num_heads=heads, matmul_dtype=jnp.float32)
    out_f32 = jax.block_until_ready(out_f32)
    assert out_f32.shape == (B, Nq, dim)
    assert jnp.allclose(out_f32, ref, atol=1e-2, rtol=1e-2), (
        float(jnp.max(jnp.abs(out_f32 - ref))))

    out_bf16 = multi_head_attention(query, kv_in, kv_in, params,
                                    num_heads=heads)   # default bf16 matmuls
    out_bf16 = jax.block_until_ready(out_bf16)
    assert jnp.allclose(out_bf16, ref, atol=8e-2, rtol=8e-2), (
        float(jnp.max(jnp.abs(out_bf16 - ref))))

    # --- Test 2: cross-attention shapes exercising the Nq-tiling grid axis. ---
    B2, Nq2, Nk2, dim2, kv_dim2, heads2 = 2, 512, 64, 128, 64, 8
    params2 = make_params(dim2, kv_dim2, jax.random.split(keys[10], 8))
    query2 = jax.random.normal(keys[11], (B2, Nq2, dim2), jnp.float32)
    key2 = jax.random.normal(keys[12], (B2, Nk2, kv_dim2), jnp.float32)
    val2 = jax.random.normal(keys[13], (B2, Nk2, kv_dim2), jnp.float32)

    ref2 = _reference(query2, key2, val2, params2, num_heads=heads2)
    out2 = multi_head_attention(query2, key2, val2, params2,
                                num_heads=heads2, matmul_dtype=jnp.float32)
    out2 = jax.block_until_ready(out2)
    assert out2.shape == (B2, Nq2, dim2)
    assert jnp.allclose(out2, ref2, atol=1e-2, rtol=1e-2), (
        float(jnp.max(jnp.abs(out2 - ref2))))

    print("KERNEL_OK")
</pallas_src>

<mosaic_0001>
module attributes {stable_mosaic.version = 11 : i64} {
  func.func @_kv_proj_kernel(%arg0: i32, %arg1: memref<1x8x32xf32, #tpu.memory_space<vmem>>, %arg2: memref<1x8x32xf32, #tpu.memory_space<vmem>>, %arg3: memref<32x32xf32, #tpu.memory_space<vmem>>, %arg4: memref<1x32xf32, #tpu.memory_space<vmem>>, %arg5: memref<32x32xf32, #tpu.memory_space<vmem>>, %arg6: memref<1x32xf32, #tpu.memory_space<vmem>>, %arg7: memref<1x8x32xf32, #tpu.memory_space<vmem>>, %arg8: memref<1x8x32xf32, #tpu.memory_space<vmem>>) attributes {dimension_semantics = [#tpu.dimension_semantics<parallel>], iteration_bounds = array<i64: 2>, scalar_prefetch = 0 : i64, scratch_operands = 0 : i64, tpu.core_type = #tpu.core_type<tc>, window_params = [{transform_indices = @transform_0, window_bounds = array<i64: 1, 8, 32>}, {transform_indices = @transform_1, window_bounds = array<i64: 1, 8, 32>}, {pipeline_mode = #tpu.pipeline_mode<synchronous>, transform_indices = @transform_2, window_bounds = array<i64: 32, 32>}, {pipeline_mode = #tpu.pipeline_mode<synchronous>, transform_indices = @transform_3, window_bounds = array<i64: 1, 32>}, {pipeline_mode = #tpu.pipeline_mode<synchronous>, transform_indices = @transform_4, window_bounds = array<i64: 32, 32>}, {pipeline_mode = #tpu.pipeline_mode<synchronous>, transform_indices = @transform_5, window_bounds = array<i64: 1, 32>}, {transform_indices = @transform_6, window_bounds = array<i64: 1, 8, 32>}, {transform_indices = @transform_7, window_bounds = array<i64: 1, 8, 32>}]} {
    %c0 = arith.constant 0 : index
    %c0_0 = arith.constant 0 : index
    %c0_1 = arith.constant 0 : index
    %0 = vector.load %arg1[%c0, %c0_0, %c0_1] : memref<1x8x32xf32, #tpu.memory_space<vmem>>, vector<1x8x32xf32>
    %1 = vector.shape_cast %0 : vector<1x8x32xf32> to vector<8x32xf32>
    %c0_2 = arith.constant 0 : index
    %c0_3 = arith.constant 0 : index
    %c0_4 = arith.constant 0 : index
    %2 = vector.load %arg2[%c0_2, %c0_3, %c0_4] : memref<1x8x32xf32, #tpu.memory_space<vmem>>, vector<1x8x32xf32>
    %3 = vector.shape_cast %2 : vector<1x8x32xf32> to vector<8x32xf32>
    %c0_5 = arith.constant 0 : index
    %c0_6 = arith.constant 0 : index
    %4 = vector.load %arg3[%c0_5, %c0_6] : memref<32x32xf32, #tpu.memory_space<vmem>>, vector<32x32xf32>
    %cst = arith.constant dense<0.000000e+00> : vector<8x32xf32>
    %5 = tpu.matmul %1, %4, %cst {dimension_numbers = #tpu.dot_dimension_numbers<[1], [0], [0], [1], [0, 0, 1, 1], [], []>} : vector<8x32xf32>, vector<32x32xf32>, vector<8x32xf32> -> vector<8x32xf32>
    %c0_7 = arith.constant 0 : index
    %c0_8 = arith.constant 0 : index
    %6 = vector.load %arg5[%c0_7, %c0_8] : memref<32x32xf32, #tpu.memory_space<vmem>>, vector<32x32xf32>
    %cst_9 = arith.constant dense<0.000000e+00> : vector<8x32xf32>
    %7 = tpu.matmul %3, %6, %cst_9 {dimension_numbers = #tpu.dot_dimension_numbers<[1], [0], [0], [1], [0, 0, 1, 1], [], []>} : vector<8x32xf32>, vector<32x32xf32>, vector<8x32xf32> -> vector<8x32xf32>
    %c0_10 = arith.constant 0 : index
    %c0_11 = arith.constant 0 : index
    %8 = vector.load %arg4[%c0_10, %c0_11] : memref<1x32xf32, #tpu.memory_space<vmem>>, vector<1x32xf32>
    %9 = vector.broadcast %8 : vector<1x32xf32> to vector<8x32xf32>
    %10 = arith.addf %5, %9 : vector<8x32xf32>
    %c0_12 = arith.constant 0 : index
    %c0_13 = arith.constant 0 : index
    %c0_14 = arith.constant 0 : index
    %11 = vector.load %arg7[%c0_12, %c0_13, %c0_14] : memref<1x8x32xf32, #tpu.memory_space<vmem>>, vector<1x8x32xf32>
    %12 = vector.shape_cast %11 : vector<1x8x32xf32> to vector<8x32xf32>
    %13 = vector.shape_cast %10 : vector<8x32xf32> to vector<1x8x32xf32>
    tpu.vector_store %arg7[%c0_12, %c0_13, %c0_14], %13 {strides = array<i32>} : memref<1x8x32xf32, #tpu.memory_space<vmem>>, vector<1x8x32xf32>,
    %c0_15 = arith.constant 0 : index
    %c0_16 = arith.constant 0 : index
    %14 = vector.load %arg6[%c0_15, %c0_16] : memref<1x32xf32, #tpu.memory_space<vmem>>, vector<1x32xf32>
    %15 = vector.broadcast %14 : vector<1x32xf32> to vector<8x32xf32>
    %16 = arith.addf %7, %15 : vector<8x32xf32>
    %c0_17 = arith.constant 0 : index
    %c0_18 = arith.constant 0 : index
    %c0_19 = arith.constant 0 : index
    %17 = vector.load %arg8[%c0_17, %c0_18, %c0_19] : memref<1x8x32xf32, #tpu.memory_space<vmem>>, vector<1x8x32xf32>
    %18 = vector.shape_cast %17 : vector<1x8x32xf32> to vector<8x32xf32>
    %19 = vector.shape_cast %16 : vector<8x32xf32> to vector<1x8x32xf32>
    tpu.vector_store %arg8[%c0_17, %c0_18, %c0_19], %19 {strides = array<i32>} : memref<1x8x32xf32, #tpu.memory_space<vmem>>, vector<1x8x32xf32>,
    return
  }
  func.func @transform_0(%arg0: i32) -> (i32, i32, i32) {
    %c0_i32 = arith.constant 0 : i32
    %c0_i32_0 = arith.constant 0 : i32
    %c0_i32_1 = arith.constant 0 : i32
    return %arg0, %c0_i32, %c0_i32_0 : i32, i32, i32
  }
  func.func @transform_1(%arg0: i32) -> (i32, i32, i32) {
    %c0_i32 = arith.constant 0 : i32
    %c0_i32_0 = arith.constant 0 : i32
    %c0_i32_1 = arith.constant 0 : i32
    return %arg0, %c0_i32, %c0_i32_0 : i32, i32, i32
  }
  func.func @transform_2(%arg0: i32) -> (i32, i32) {
    %c0_i32 = arith.constant 0 : i32
    %c0_i32_0 = arith.constant 0 : i32
    %c0_i32_1 = arith.constant 0 : i32
    return %c0_i32, %c0_i32_0 : i32, i32
  }
  func.func @transform_3(%arg0: i32) -> (i32, i32) {
    %c0_i32 = arith.constant 0 : i32
    %c0_i32_0 = arith.constant 0 : i32
    %c0_i32_1 = arith.constant 0 : i32
    return %c0_i32, %c0_i32_0 : i32, i32
  }
  func.func @transform_4(%arg0: i32) -> (i32, i32) {
    %c0_i32 = arith.constant 0 : i32
    %c0_i32_0 = arith.constant 0 : i32
    %c0_i32_1 = arith.constant 0 : i32
    return %c0_i32, %c0_i32_0 : i32, i32
  }
  func.func @transform_5(%arg0: i32) -> (i32, i32) {
    %c0_i32 = arith.constant 0 : i32
    %c0_i32_0 = arith.constant 0 : i32
    %c0_i32_1 = arith.constant 0 : i32
    return %c0_i32, %c0_i32_0 : i32, i32
  }
  func.func @transform_6(%arg0: i32) -> (i32, i32, i32) {
    %c0_i32 = arith.constant 0 : i32
    %c0_i32_0 = arith.constant 0 : i32
    %c0_i32_1 = arith.constant 0 : i32
    return %arg0, %c0_i32, %c0_i32_0 : i32, i32, i32
  }
  func.func @transform_7(%arg0: i32) -> (i32, i32, i32) {
    %c0_i32 = arith.constant 0 : i32
    %c0_i32_0 = arith.constant 0 : i32
    %c0_i32_1 = arith.constant 0 : i32
    return %arg0, %c0_i32, %c0_i32_0 : i32, i32, i32
  }
}

</mosaic_0001>

<llo_original>
// kernel: tpu_custom_call.1
$region0: #{tpu_custom_call.1}
  #allocation0 [shape = 'u32[]', space=smem, size = 0x4, offset = 0x4, fixed_abs, tag = 'smem constant byte address 0x4 - core index']
  #allocation1 [shape = 'u32[72,128]{1,0:T(1,128)}', space=vmem, size = 0x9000, scoped, tag = 'internal scratch']
  %s0 = inlined_call_operand.hbm [shape: f32[2,8,32], index: 0, kind: input, shape index: {}]
  %s1 = inlined_call_operand.hbm [shape: f32[2,8,32], index: 1, kind: input, shape index: {}]
  %s2 = inlined_call_operand.hbm [shape: f32[32,32], index: 2, kind: input, shape index: {}]
  %s3 = inlined_call_operand.vmem [shape: f32[1,32], index: 3, kind: input, shape index: {}]
  %s4 = inlined_call_operand.hbm [shape: f32[32,32], index: 4, kind: input, shape index: {}]
  %s5 = inlined_call_operand.vmem [shape: f32[1,32], index: 5, kind: input, shape index: {}]
  %s6 = inlined_call_operand.hbm [shape: f32[2,8,32], index: 6, kind: output, shape index: {0}]
  %s7 = inlined_call_operand.hbm [shape: f32[2,8,32], index: 7, kind: output, shape index: {1}]
  %8 = xla_tuple %s6, %s7
  %s9 = sld [smem:[#allocation0]]
  $region81: #{tpu_custom_call.1} parent=0
    _
  %s11 = ssub.s32 1, %s9
  %s12 = scalar_select 0, %s11, %s9
  $region1: #{tpu_custom_call.1} parent=0
    #allocation2 [shape = 'u8[8192]{0}', space=vmem, size = 0x2000, scoped, tag = 'input window, operand 0']
    #allocation3 [shape = 's32[2]{0}', space=sflag, size = 0x8, scoped, tag = 'scoped memory for tpu_custom_call.1']
    #allocation4 [shape = 's32[2]{0}', space=sflag, size = 0x8, scoped, tag = 'scoped memory for tpu_custom_call.1']
    #allocation5 [shape = 'u8[8192]{0}', space=vmem, size = 0x2000, scoped, tag = 'input window, operand 1']
    #allocation6 [shape = 's32[2]{0}', space=sflag, size = 0x8, scoped, tag = 'scoped memory for tpu_custom_call.1']
    #allocation7 [shape = 'u8[16384]{0}', space=vmem, size = 0x4000, scoped, tag = 'input window, operand 2, single buffered']
    #allocation8 [shape = 'u8[16384]{0}', space=vmem, size = 0x4000, scoped, tag = 'input window, operand 4, single buffered']
    #allocation9 [shape = 's32[1]{0}', space=sflag, size = 0x4, scoped, tag = 'scoped memory for tpu_custom_call.1']
    #allocation10 [shape = 'u8[8192]{0}', space=vmem, size = 0x2000, scoped, tag = 'output window, operand 0']
    #allocation11 [shape = 'u8[8192]{0}', space=vmem, size = 0x2000, scoped, tag = 'output window, operand 1']
    #allocation12 [shape = 's32[2]{0}', space=sflag, size = 0x8, scoped, tag = 'scoped memory for tpu_custom_call.1']
    %13 = vsyncpa [#allocation3], 0
    %s14 = scalar_lea.sflag [#allocation3], 1
    %15 = vsyncpa %s14, 0
    %16 = vsyncpa [#allocation6], 0
    %s17 = scalar_lea.sflag [#allocation6], 1
    %18 = vsyncpa %s17, 0
    %19 = vsyncpa [#allocation9], 0
    %20 = vsyncpa [#allocation4], 0
    %s21 = scalar_lea.sflag [#allocation4], 1
    %22 = vsyncpa %s21, 0
    %23 = vsyncpa [#allocation12], 0
    %s24 = scalar_lea.sflag [#allocation12], 1
    %25 = vsyncpa %s24, 0
    loop: start=0, step=1, limit=4
    $region2: #{tpu_custom_call.1} parent=1 // loop_pre_header
      _
    $region3: #{tpu_custom_call.1} parent=1 // loop_header
      %s27 = sphi 0, %s31
      %p28 = scmp.ge.s32.totalorder %s27, 4
      %s37 = sphi 0, %s39
      %s40 = sphi 0, %s37
      %s41 = sphi 0, %s40
      %s57 = sphi 0, %s41
      %s63 = sphi 0, %s65
      %s66 = sphi 0, %s63
      %s67 = sphi 0, %s66
      %s83 = sphi 0, %s67
      %s87 = sphi 0, %s87
      %s89 = sphi 0, %s87
      %s90 = sphi 0, %s89
      %s104 = sphi 0, %s90
      %s108 = sphi 0, %s108
      %s110 = sphi 0, %s108
      %s111 = sphi 0, %s110
      %s125 = sphi 0, %s111
      %s129 = sphi 0, %s129
      %s131 = sphi 0, %s129
      %s132 = sphi 0, %s131
      %s146 = sphi 0, %s132
      %s150 = sphi 0, %s150
      %s152 = sphi 0, %s150
      %s153 = sphi 0, %s152
      %s167 = sphi 0, %s153
      %s173 = sphi 0, %s175
      %s176 = sphi 0, %s173
      %s177 = sphi 0, %s176
      %s193 = sphi 0, %s177
      %s199 = sphi 0, %s201
      %s202 = sphi 0, %s199
      %s203 = sphi 0, %s202
      %s219 = sphi 0, %s203
    $region4: #{tpu_custom_call.1} parent=1 // loop_header_branch
      %30 = sbr.rel (%p28) target = $region8
    $region5: #{tpu_custom_call.1} parent=1 // loop_body
      %s32 = ssub.s32 %s27, 1
      %s33 = ssub.s32 %s27, 2
      %s34 = sadd.s32 %s27, 1
      %s35 = ssub.s32 %s27, %s34
      %p36 = scmp.eq.s32.totalorder %s35, 0
      %s38 = sadd.s32 %s37, 1
      %s39 = scalar_select %p36, %s37, %s38
      %p42 = pneg %p36
      %p43 = scmp.eq.s32.totalorder %s27, 1
      %p44 = por %p42, %p43
      %p45 = scmp.ne.s32.totalorder %s37, %s40
      %p46 = scmp.eq.s32.totalorder %s27, 0
      %p47 = por %p45, %p46
      %p48 = scmp.ne.s32.totalorder %s37, %s40
      %p49 = scmp.eq.s32.totalorder %s32, 1
      %p50 = por %p48, %p49
      %p51 = scmp.ne.s32.totalorder %s40, %s41
      %p52 = scmp.eq.s32.totalorder %s32, 0
      %p53 = por %p51, %p52
      %p54 = scmp.ne.s32.totalorder %s40, %s41
      %p55 = scmp.eq.s32.totalorder %s33, 1
      %p56 = por %p54, %p55
      %p58 = scmp.ne.s32.totalorder %s41, %s57
      %p59 = scmp.eq.s32.totalorder %s33, 0
      %p60 = por %p58, %p59
      %s61 = ssub.s32 %s27, %s34
      %p62 = scmp.eq.s32.totalorder %s61, 0
      %s64 = sadd.s32 %s63, 1
      %s65 = scalar_select %p62, %s63, %s64
      %p68 = pneg %p62
      %p69 = scmp.eq.s32.totalorder %s27, 1
      %p70 = por %p68, %p69
      %p71 = scmp.ne.s32.totalorder %s63, %s66
      %p72 = scmp.eq.s32.totalorder %s27, 0
      %p73 = por %p71, %p72
      %p74 = scmp.ne.s32.totalorder %s63, %s66
      %p75 = scmp.eq.s32.totalorder %s32, 1
      %p76 = por %p74, %p75
      %p77 = scmp.ne.s32.totalorder %s66, %s67
      %p78 = scmp.eq.s32.totalorder %s32, 0
      %p79 = por %p77, %p78
      %p80 = scmp.ne.s32.totalorder %s66, %s67
      %p81 = scmp.eq.s32.totalorder %s33, 1
      %p82 = por %p80, %p81
      %p84 = scmp.ne.s32.totalorder %s67, %s83
      %p85 = scmp.eq.s32.totalorder %s33, 0
      %p86 = por %p84, %p85
      %s88 = sadd.s32 %s87, 1
      %p91 = scmp.eq.s32.totalorder %s27, 1
      %p92 = scmp.ne.s32.totalorder %s87, %s89
      %p93 = scmp.eq.s32.totalorder %s27, 0
      %p94 = por %p92, %p93
      %p95 = scmp.ne.s32.totalorder %s87, %s89
      %p96 = scmp.eq.s32.totalorder %s32, 1
      %p97 = por %p95, %p96
      %p98 = scmp.ne.s32.totalorder %s89, %s90
      %p99 = scmp.eq.s32.totalorder %s32, 0
      %p100 = por %p98, %p99
      %p101 = scmp.ne.s32.totalorder %s89, %s90
      %p102 = scmp.eq.s32.totalorder %s33, 1
      %p103 = por %p101, %p102
      %p105 = scmp.ne.s32.totalorder %s90, %s104
      %p106 = scmp.eq.s32.totalorder %s33, 0
      %p107 = por %p105, %p106
      %s109 = sadd.s32 %s108, 1
      %p112 = scmp.eq.s32.totalorder %s27, 1
      %p113 = scmp.ne.s32.totalorder %s108, %s110
      %p114 = scmp.eq.s32.totalorder %s27, 0
      %p115 = por %p113, %p114
      %p116 = scmp.ne.s32.totalorder %s108, %s110
      %p117 = scmp.eq.s32.totalorder %s32, 1
      %p118 = por %p116, %p117
      %p119 = scmp.ne.s32.totalorder %s110, %s111
      %p120 = scmp.eq.s32.totalorder %s32, 0
      %p121 = por %p119, %p120
      %p122 = scmp.ne.s32.totalorder %s110, %s111
      %p123 = scmp.eq.s32.totalorder %s33, 1
      %p124 = por %p122, %p123
      %p126 = scmp.ne.s32.totalorder %s111, %s125
      %p127 = scmp.eq.s32.totalorder %s33, 0
      %p128 = por %p126, %p127
      %s130 = sadd.s32 %s129, 1
      %p133 = scmp.eq.s32.totalorder %s27, 1
      %p134 = scmp.ne.s32.totalorder %s129, %s131
      %p135 = scmp.eq.s32.totalorder %s27, 0
      %p136 = por %p134, %p135
      %p137 = scmp.ne.s32.totalorder %s129, %s131
      %p138 = scmp.eq.s32.totalorder %s32, 1
      %p139 = por %p137, %p138
      %p140 = scmp.ne.s32.totalorder %s131, %s132
      %p141 = scmp.eq.s32.totalorder %s32, 0
      %p142 = por %p140, %p141
      %p143 = scmp.ne.s32.totalorder %s131, %s132
      %p144 = scmp.eq.s32.totalorder %s33, 1
      %p145 = por %p143, %p144
      %p147 = scmp.ne.s32.totalorder %s132, %s146
      %p148 = scmp.eq.s32.totalorder %s33, 0
      %p149 = por %p147, %p148
      %s151 = sadd.s32 %s150, 1
      %p154 = scmp.eq.s32.totalorder %s27, 1
      %p155 = scmp.ne.s32.totalorder %s150, %s152
      %p156 = scmp.eq.s32.totalorder %s27, 0
      %p157 = por %p155, %p156
      %p158 = scmp.ne.s32.totalorder %s150, %s152
      %p159 = scmp.eq.s32.totalorder %s32, 1
      %p160 = por %p158, %p159
      %p161 = scmp.ne.s32.totalorder %s152, %s153
      %p162 = scmp.eq.s32.totalorder %s32, 0
      %p163 = por %p161, %p162
      %p164 = scmp.ne.s32.totalorder %s152, %s153
      %p165 = scmp.eq.s32.totalorder %s33, 1
      %p166 = por %p164, %p165
      %p168 = scmp.ne.s32.totalorder %s153, %s167
      %p169 = scmp.eq.s32.totalorder %s33, 0
      %p170 = por %p168, %p169
      %s171 = ssub.s32 %s27, %s34
      %p172 = scmp.eq.s32.totalorder %s171, 0
      %s174 = sadd.s32 %s173, 1
      %s175 = scalar_select %p172, %s173, %s174
      %p178 = pneg %p172
      %p179 = scmp.eq.s32.totalorder %s27, 1
      %p180 = por %p178, %p179
      %p181 = scmp.ne.s32.totalorder %s173, %s176
      %p182 = scmp.eq.s32.totalorder %s27, 0
      %p183 = por %p181, %p182
      %p184 = scmp.ne.s32.totalorder %s173, %s176
      %p185 = scmp.eq.s32.totalorder %s32, 1
      %p186 = por %p184, %p185
      %p187 = scmp.ne.s32.totalorder %s176, %s177
      %p188 = scmp.eq.s32.totalorder %s32, 0
      %p189 = por %p187, %p188
      %p190 = scmp.ne.s32.totalorder %s176, %s177
      %p191 = scmp.eq.s32.totalorder %s33, 1
      %p192 = por %p190, %p191
      %p194 = scmp.ne.s32.totalorder %s177, %s193
      %p195 = scmp.eq.s32.totalorder %s33, 0
      %p196 = por %p194, %p195
      %s197 = ssub.s32 %s27, %s34
      %p198 = scmp.eq.s32.totalorder %s197, 0
      %s200 = sadd.s32 %s199, 1
      %s201 = scalar_select %p198, %s199, %s200
      %p204 = pneg %p198
      %p205 = scmp.eq.s32.totalorder %s27, 1
      %p206 = por %p204, %p205
      %p207 = scmp.ne.s32.totalorder %s199, %s202
      %p208 = scmp.eq.s32.totalorder %s27, 0
      %p209 = por %p207, %p208
      %p210 = scmp.ne.s32.totalorder %s199, %s202
      %p211 = scmp.eq.s32.totalorder %s32, 1
      %p212 = por %p210, %p211
      %p213 = scmp.ne.s32.totalorder %s202, %s203
      %p214 = scmp.eq.s32.totalorder %s32, 0
      %p215 = por %p213, %p214
      %p216 = scmp.ne.s32.totalorder %s202, %s203
      %p217 = scmp.eq.s32.totalorder %s33, 1
      %p218 = por %p216, %p217
      %p220 = scmp.ne.s32.totalorder %s203, %s219
      %p221 = scmp.eq.s32.totalorder %s33, 0
      %p222 = por %p220, %p221
      %p223 = scmp.le.s32.totalorder 1, %s27
      %p224 = scmp.lt.s32.totalorder %s27, 3
      %p225 = pnand %p223, %p224
      %p226 = pneg %p225
      // Predicated region
      $region9: #{tpu_custom_call.1} parent=5 // pred_check
        _
      $region10: #{tpu_custom_call.1} parent=5 // pred_check_branch
        %228 = sbr.rel (%p225) target = $region12
      $region11: #{tpu_custom_call.1} parent=5 // pred_region
        %s229 = ssub.s32 %s27, 1
        // Predicated region
        $region13: #{tpu_custom_call.1} parent=11 // pred_check
          %p230 = pneg %p100
        $region14: #{tpu_custom_call.1} parent=11 // pred_check_branch
          %232 = sbr.rel (%p230) target = $region16
        $region15: #{tpu_custom_call.1} parent=11 // pred_region
          %234 = vsyncadd [#allocation6], 0
          %s235 = sshll.u32 %s2, 4
          %s236 = int_to_ptr.hbm [resolvable:$true] %s235
          %s237 = sshll.u32 [#allocation7], 4
          %s238 = int_to_ptr.vmem [resolvable:$true] %s237
          %243 = dma.hbm_to_vmem [thread:$0]  %s236, 512, %s238, [#allocation6], 128, 128, 8
        $region16: #{tpu_custom_call.1} parent=11 // pred_fallthru
          _
        // Predicated region
        $region17: #{tpu_custom_call.1} parent=11 // pred_check
          %p244 = pneg %p121
        $region18: #{tpu_custom_call.1} parent=11 // pred_check_branch
          %246 = sbr.rel (%p244) target = $region20
        $region19: #{tpu_custom_call.1} parent=11 // pred_region
          _
        $region20: #{tpu_custom_call.1} parent=11 // pred_fallthru
          _
        // Predicated region
        $region21: #{tpu_custom_call.1} parent=11 // pred_check
          %p247 = pneg %p142
        $region22: #{tpu_custom_call.1} parent=11 // pred_check_branch
          %249 = sbr.rel (%p247) target = $region24
        $region23: #{tpu_custom_call.1} parent=11 // pred_region
          %251 = vsyncadd [#allocation9], 0
          %s252 = sshll.u32 %s4, 4
          %s253 = int_to_ptr.hbm [resolvable:$true] %s252
          %s254 = sshll.u32 [#allocation8], 4
          %s255 = int_to_ptr.vmem [resolvable:$true] %s254
          %260 = dma.hbm_to_vmem [thread:$0]  %s253, 512, %s255, [#allocation9], 128, 128, 8
        $region24: #{tpu_custom_call.1} parent=11 // pred_fallthru
          _
        // Predicated region
        $region25: #{tpu_custom_call.1} parent=11 // pred_check
          %p261 = pneg %p163
        $region26: #{tpu_custom_call.1} parent=11 // pred_check_branch
          %263 = sbr.rel (%p261) target = $region28
        $region27: #{tpu_custom_call.1} parent=11 // pred_region
          _
        $region28: #{tpu_custom_call.1} parent=11 // pred_fallthru
          _
      $region12: #{tpu_custom_call.1} parent=5 // pred_fallthru
        _
      %p264 = scmp.lt.s32.totalorder %s27, 2
      // Predicated region
      $region29: #{tpu_custom_call.1} parent=5 // pred_check
        %p265 = pneg %p264
      $region30: #{tpu_custom_call.1} parent=5 // pred_check_branch
        %267 = sbr.rel (%p265) target = $region32
      $region31: #{tpu_custom_call.1} parent=5 // pred_region
        // Predicated region
        $region33: #{tpu_custom_call.1} parent=31 // pred_check
          %p268 = pneg %p47
        $region34: #{tpu_custom_call.1} parent=31 // pred_check_branch
          %270 = sbr.rel (%p268) target = $region36
        $region35: #{tpu_custom_call.1} parent=31 // pred_region
          %s271 = sand.u32 %s37, 1
          %s272 = scalar_lea.sflag [#allocation3], %s271
          %s273 = sand.u32 %s37, 1
          %s274 = smul.addr %s273, 8
          %s275 = scalar_lea.vmem [#allocation2], %s274
          %277 = vsyncadd %s272, 0
          %s278 = smul.addr %s27, 8
          %s279 = scalar_lea.hbm %s0, %s278
          %s281 = sshll.u32 %s279, 4
          %s282 = int_to_ptr.hbm [resolvable:$true] %s281
          %s283 = sshll.u32 %s275, 4
          %s284 = int_to_ptr.vmem [resolvable:$true] %s283
          %286 = dma.hbm_to_vmem [thread:$0]  %s282, 128, %s284, %s272
        $region36: #{tpu_custom_call.1} parent=31 // pred_fallthru
          _
        // Predicated region
        $region37: #{tpu_custom_call.1} parent=31 // pred_check
          %p287 = pneg %p73
        $region38: #{tpu_custom_call.1} parent=31 // pred_check_branch
          %289 = sbr.rel (%p287) target = $region40
        $region39: #{tpu_custom_call.1} parent=31 // pred_region
          %s290 = sand.u32 %s27, 1
          %s291 = scalar_lea.sflag [#allocation6], %s290
          %s292 = sand.u32 %s63, 1
          %s293 = smul.addr %s292, 8
          %s294 = scalar_lea.vmem [#allocation5], %s293
          %296 = vsyncadd %s291, 0
          %s297 = smul.addr %s27, 8
          %s298 = scalar_lea.hbm %s1, %s297
          %s300 = sshll.u32 %s298, 4
          %s301 = int_to_ptr.hbm [resolvable:$true] %s300
          %s302 = sshll.u32 %s294, 4
          %s303 = int_to_ptr.vmem [resolvable:$true] %s302
          %305 = dma.hbm_to_vmem [thread:$0]  %s301, 128, %s303, %s291
        $region40: #{tpu_custom_call.1} parent=31 // pred_fallthru
          _
      $region32: #{tpu_custom_call.1} parent=5 // pred_fallthru
        _
      %p306 = scmp.le.s32.totalorder 1, %s27
      %p307 = scmp.lt.s32.totalorder %s27, 3
      %p308 = pnand %p306, %p307
      %p309 = pneg %p308
      // Predicated region
      $region41: #{tpu_custom_call.1} parent=5 // pred_check
        _
      $region42: #{tpu_custom_call.1} parent=5 // pred_check_branch
        %311 = sbr.rel (%p308) target = $region44
      $region43: #{tpu_custom_call.1} parent=5 // pred_region
        %s312 = ssub.s32 %s27, 1
        %s313 = sand.u32 %s40, 1
        %s314 = scalar_lea.sflag [#allocation3], %s313
        %s315 = sand.u32 %s40, 1
        %s316 = smul.addr %s315, 8
        %s317 = scalar_lea.vmem [#allocation2], %s316
        // Predicated region
        $region45: #{tpu_custom_call.1} parent=43 // pred_check
          %p318 = pneg %p53
        $region46: #{tpu_custom_call.1} parent=43 // pred_check_branch
          %320 = sbr.rel (%p318) target = $region48
        $region47: #{tpu_custom_call.1} parent=43 // pred_region
          %322 = dma.done %s314, 128
        $region48: #{tpu_custom_call.1} parent=43 // pred_fallthru
          _
        %s323 = sand.u32 %s32, 1
        %s324 = scalar_lea.sflag [#allocation6], %s323
        %s325 = sand.u32 %s66, 1
        %s326 = smul.addr %s325, 8
        %s327 = scalar_lea.vmem [#allocation5], %s326
        // Predicated region
        $region49: #{tpu_custom_call.1} parent=43 // pred_check
          %p328 = pneg %p79
        $region50: #{tpu_custom_call.1} parent=43 // pred_check_branch
          %330 = sbr.rel (%p328) target = $region52
        $region51: #{tpu_custom_call.1} parent=43 // pred_region
          %332 = dma.done %s324, 128
        $region52: #{tpu_custom_call.1} parent=43 // pred_fallthru
          _
        // Predicated region
        $region53: #{tpu_custom_call.1} parent=43 // pred_check
          %p333 = pneg %p100
        $region54: #{tpu_custom_call.1} parent=43 // pred_check_branch
          %335 = sbr.rel (%p333) target = $region56
        $region55: #{tpu_custom_call.1} parent=43 // pred_region
          %337 = dma.done [#allocation6], 512
        $region56: #{tpu_custom_call.1} parent=43 // pred_fallthru
          _
        // Predicated region
        $region57: #{tpu_custom_call.1} parent=43 // pred_check
          %p338 = pneg %p142
        $region58: #{tpu_custom_call.1} parent=43 // pred_check_branch
          %340 = sbr.rel (%p338) target = $region60
        $region59: #{tpu_custom_call.1} parent=43 // pred_region
          %342 = dma.done [#allocation9], 512
        $region60: #{tpu_custom_call.1} parent=43 // pred_fallthru
          _
        %s343 = sand.u32 %s40, 1
        %s344 = scalar_lea.sflag [#allocation3], %s343
        %s345 = sand.u32 %s40, 1
        %s346 = smul.addr %s345, 8
        %s347 = scalar_lea.vmem [#allocation2], %s346
        %p348 = pneg %p53
        %p349 = pneg %p50
        %s350 = sand.u32 %s32, 1
        %s351 = scalar_lea.sflag [#allocation6], %s350
        %s352 = sand.u32 %s66, 1
        %s353 = smul.addr %s352, 8
        %s354 = scalar_lea.vmem [#allocation5], %s353
        %p355 = pneg %p79
        %p356 = pneg %p76
        %p357 = pneg %p100
        %p358 = pneg %p97
        %p359 = pneg %p121
        %p360 = pneg %p118
        %p361 = pneg %p142
        %p362 = pneg %p139
        %p363 = pneg %p163
        %p364 = pneg %p160
        %p365 = pneg %p189
        %p366 = pneg %p186
        %s367 = sand.u32 %s176, 1
        %s368 = scalar_lea.sflag [#allocation4], %s367
        %s369 = sand.u32 %s176, 1
        %s370 = smul.addr %s369, 8
        %s371 = scalar_lea.vmem [#allocation10], %s370
        %p372 = pneg %p215
        %p373 = pneg %p212
        %s374 = sand.u32 %s202, 1
        %s375 = scalar_lea.sflag [#allocation12], %s374
        %s376 = sand.u32 %s202, 1
        %s377 = smul.addr %s376, 8
        %s378 = scalar_lea.vmem [#allocation11], %s377
        %v379 = vld [vmem:[%s317] sm:$0xff]
        %v380 = vld [vmem:[%s327] sm:$0xff]
        %v381 = vld [vmem:[#allocation7] sm:$0xff]
        %v382 = vld [vmem:[#allocation7 + $0x8] sm:$0xff]
        %v383 = vld [vmem:[#allocation7 + $0x10] sm:$0xff]
        %v384 = vld [vmem:[#allocation7 + $0x18] sm:$0xff]
        %v385 = vld [vmem:[#allocation8] sm:$0xff]
        %v386 = vld [vmem:[#allocation8 + $0x8] sm:$0xff]
        %v387 = vld [vmem:[#allocation8 + $0x10] sm:$0xff]
        %v388 = vld [vmem:[#allocation8 + $0x18] sm:$0xff]
        %v389 = vld [vmem:[%s3] sm:$0x1]
        %v391 = vperm.slane %v389, 0
        %vm393 = vcmask 261120
        %v395 = vsel %vm393, %v379, 0
        %397 = vmatpush.msra.mxu0 0.0
        %398 = vmatpush.msra.mxu0 0.0
        %399 = vmatpush.msra.mxu0 0.0
        %400 = vmatpush.msra.mxu0 0.0
        %401 = vmatpush.msra.mxu0 0.0
        %402 = vmatpush.msra.mxu0 0.0
        %403 = vmatpush.msra.mxu0 0.0
        %404 = vmatpush.msra.mxu0 0.0
        %405 = vmatpush.msra.mxu0 0.0
        %406 = vmatpush.msra.mxu0 0.0
        %407 = vmatpush.msra.mxu0 0.0
        %408 = vmatpush.msra.mxu0 0.0
        %409 = vmatpush.msra.mxu0 %v384
        %410 = vmatpush.msra.mxu0 %v383
        %411 = vmatpush.msra.mxu0 %v382
        %412 = vmatpush.msra.mxu0 %v381
        %413 = vmatmul.f32.gmra.mxu0 %v395
        %v414 = vpop.f32.mrf.mxu0
        %v415 = vadd.f32 %v391, %v414
        %416 = vdwg.mxu0
        %417 = vst.msk [vmem:[%s371] sm:$0xff] %vm393, %v415
        %v418 = vld [vmem:[%s5] sm:$0x1]
        %v420 = vperm.slane %v418, 0
        %v423 = vsel %vm393, %v380, 0
        %425 = vmatpush.msra.mxu0 0.0
        %426 = vmatpush.msra.mxu0 0.0
        %427 = vmatpush.msra.mxu0 0.0
        %428 = vmatpush.msra.mxu0 0.0
        %429 = vmatpush.msra.mxu0 0.0
        %430 = vmatpush.msra.mxu0 0.0
        %431 = vmatpush.msra.mxu0 0.0
        %432 = vmatpush.msra.mxu0 0.0
        %433 = vmatpush.msra.mxu0 0.0
        %434 = vmatpush.msra.mxu0 0.0
        %435 = vmatpush.msra.mxu0 0.0
        %436 = vmatpush.msra.mxu0 0.0
        %437 = vmatpush.msra.mxu0 %v388
        %438 = vmatpush.msra.mxu0 %v387
        %439 = vmatpush.msra.mxu0 %v386
        %440 = vmatpush.msra.mxu0 %v385
        %441 = vmatmul.f32.gmra.mxu0 %v423
        %v442 = vpop.f32.mrf.mxu0
        %v443 = vadd.f32 %v420, %v442
        %444 = vdwg.mxu0
        %445 = vst.msk [vmem:[%s378] sm:$0xff] %vm393, %v443
        %s446 = sand.u32 %s176, 1
        %s447 = scalar_lea.sflag [#allocation4], %s446
        %s448 = sand.u32 %s176, 1
        %s449 = smul.addr %s448, 8
        %s450 = scalar_lea.vmem [#allocation10], %s449
        %s451 = sand.u32 %s202, 1
        %s452 = scalar_lea.sflag [#allocation12], %s451
        %s453 = sand.u32 %s202, 1
        %s454 = smul.addr %s453, 8
        %s455 = scalar_lea.vmem [#allocation11], %s454
        // Predicated region
        $region61: #{tpu_custom_call.1} parent=43 // pred_check
          %p456 = pneg %p186
        $region62: #{tpu_custom_call.1} parent=43 // pred_check_branch
          %458 = sbr.rel (%p456) target = $region64
        $region63: #{tpu_custom_call.1} parent=43 // pred_region
          %460 = vsyncadd %s447, 0
          %s461 = smul.addr %s32, 8
          %s462 = scalar_lea.hbm %s6, %s461
          %s464 = sshll.u32 %s450, 4
          %s465 = int_to_ptr.vmem [resolvable:$true] %s464
          %s466 = sshll.u32 %s462, 4
          %s467 = int_to_ptr.hbm [resolvable:$true] %s466
          %469 = dma.vmem_to_hbm [thread:$0]  %s465, 128, %s467, %s447
        $region64: #{tpu_custom_call.1} parent=43 // pred_fallthru
          _
        // Predicated region
        $region65: #{tpu_custom_call.1} parent=43 // pred_check
          %p470 = pneg %p212
        $region66: #{tpu_custom_call.1} parent=43 // pred_check_branch
          %472 = sbr.rel (%p470) target = $region68
        $region67: #{tpu_custom_call.1} parent=43 // pred_region
          %474 = vsyncadd %s452, 0
          %s475 = smul.addr %s32, 8
          %s476 = scalar_lea.hbm %s7, %s475
          %s478 = sshll.u32 %s455, 4
          %s479 = int_to_ptr.vmem [resolvable:$true] %s478
          %s480 = sshll.u32 %s476, 4
          %s481 = int_to_ptr.hbm [resolvable:$true] %s480
          %483 = dma.vmem_to_hbm [thread:$0]  %s479, 128, %s481, %s452
        $region68: #{tpu_custom_call.1} parent=43 // pred_fallthru
          _
      $region44: #{tpu_custom_call.1} parent=5 // pred_fallthru
        _
      %p484 = scmp.le.s32.totalorder 2, %s27
      // Predicated region
      $region69: #{tpu_custom_call.1} parent=5 // pred_check
        %p485 = pneg %p484
      $region70: #{tpu_custom_call.1} parent=5 // pred_check_branch
        %487 = sbr.rel (%p485) target = $region72
      $region71: #{tpu_custom_call.1} parent=5 // pred_region
        %s488 = ssub.s32 %s27, 2
        // Predicated region
        $region73: #{tpu_custom_call.1} parent=71 // pred_check
          %p489 = pneg %p192
        $region74: #{tpu_custom_call.1} parent=71 // pred_check_branch
          %491 = sbr.rel (%p489) target = $region76
        $region75: #{tpu_custom_call.1} parent=71 // pred_region
          %s492 = sand.u32 %s177, 1
          %s493 = scalar_lea.sflag [#allocation4], %s492
          %s494 = sand.u32 %s177, 1
          %s495 = smul.addr %s494, 8
          %s496 = scalar_lea.vmem [#allocation10], %s495
          %498 = dma.done %s493, 128
        $region76: #{tpu_custom_call.1} parent=71 // pred_fallthru
          _
        // Predicated region
        $region77: #{tpu_custom_call.1} parent=71 // pred_check
          %p499 = pneg %p218
        $region78: #{tpu_custom_call.1} parent=71 // pred_check_branch
          %501 = sbr.rel (%p499) target = $region80
        $region79: #{tpu_custom_call.1} parent=71 // pred_region
          %s502 = sand.u32 %s203, 1
          %s503 = scalar_lea.sflag [#allocation12], %s502
          %s504 = sand.u32 %s203, 1
          %s505 = smul.addr %s504, 8
          %s506 = scalar_lea.vmem [#allocation11], %s505
          %508 = dma.done %s503, 128
        $region80: #{tpu_custom_call.1} parent=71 // pred_fallthru
          _
      $region72: #{tpu_custom_call.1} parent=5 // pred_fallthru
        _
    $region6: #{tpu_custom_call.1} parent=1 // loop_footer
      %s31 = sadd.s32 1, %s27
    $region7: #{tpu_custom_call.1} parent=1 // loop_footer_branch
      %26 = sbr.rel target = $region3
    $region8: #{tpu_custom_call.1} parent=1 // loop_exit
      _
    %509 = vsyncpa [#allocation3], 1
    %s510 = scalar_lea.sflag [#allocation3], 1
    %511 = vsyncpa %s510, 1
    %512 = vsyncpa [#allocation6], 1
    %s513 = scalar_lea.sflag [#allocation6], 1
    %514 = vsyncpa %s513, 1
    %515 = vsyncpa [#allocation9], 1
    %516 = vsyncpa [#allocation4], 1
    %s517 = scalar_lea.sflag [#allocation4], 1
    %518 = vsyncpa %s517, 1
    %519 = vsyncpa [#allocation12], 1
    %s520 = scalar_lea.sflag [#allocation12], 1
    %521 = vsyncpa %s520, 1

</llo_original>
